<compile_context>
chip_gen: v7x
topology: tpu7x:2x2x1
jax: 0.10.0
libtpu: 0.0.40
codegen_flags: <defaults>
</compile_context>

<pallas_src>
import jax
import jax.numpy as jnp
from jax.experimental import pallas as pl
from jax.experimental.pallas import tpu as pltpu


def mlp_kernel(x_ref, w1_ref, b1_ref, w2k_ref, b2_ref, o_ref, h_ref, acc_ref):
    """Grid = (batch tiles, fc2 K tiles).  Reduction axis (k) is innermost."""
    k = pl.program_id(1)
    nk = pl.num_programs(1)
    tk = w2k_ref.shape[0]

    # fc1 + bias + ReLU once per batch tile; stash into VMEM scratch in the
    # fc2 operand dtype (bf16 if requested) so fc2 runs the native MXU path.
    @pl.when(k == 0)
    def _():
        h = jnp.dot(x_ref[...], w1_ref[...], preferred_element_type=jnp.float32)
        h = jnp.maximum(h + b1_ref[...], 0.0)
        h_ref[...] = h if h.dtype == h_ref.dtype else h.astype(h_ref.dtype)
        acc_ref[...] = jnp.zeros_like(acc_ref)

    # fc2, K-tiled: acc += h[:, k*tk:(k+1)*tk] @ w2[k*tk:(k+1)*tk, :]
    start = pl.multiple_of(k * tk, tk)
    acc_ref[...] += jnp.dot(h_ref[:, pl.ds(start, tk)], w2k_ref[...],
                            preferred_element_type=jnp.float32)

    @pl.when(k == nk - 1)
    def _():
        y = acc_ref[...] + b2_ref[...]
        o_ref[...] = y if y.dtype == o_ref.dtype else y.astype(o_ref.dtype)


def _pick_batch_tile(B):
    # Single tile for small B (no grid-step overhead).  For larger B prefer
    # 512-row tiles (grid-step amortization, full MXU M dim) but always keep
    # >= 2 tiles so the parallel batch axis can shard across 2 TCs (v7x).
    if B <= 256:
        return B
    for cand in (512, 384, 256, 128, 64, 32, 16, 8):
        if B % cand == 0 and B // cand >= 2:
            return cand
    return B


def _pick_k_tile(H, itemsize, budget_bytes=16 << 20):
    # Keep w2 fully resident while it comfortably fits a per-core VMEM budget
    # (v7x has only 64 MiB/TC); otherwise tile the fc2 contraction dim.
    if H * H * itemsize <= budget_bytes or H % 128 != 0:
        return H
    tk = max(128, (budget_bytes // (2 * H * itemsize)) // 128 * 128)
    while H % tk != 0:
        tk -= 128
    return max(tk, 128)


def custom_classifier(x, w1, b1, w2, b2, *, tb=None, tk=None, compute_dtype=None):
    """y = relu(x @ w1 + b1) @ w2 + b2   (PyTorch: fc2(relu(fc1(x)))).

    x:  (B, F)   activations
    w1: (F, H)   fc1 weight (transposed vs. nn.Linear)
    b1: (H,)     fc1 bias
    w2: (H, O)   fc2 weight (transposed vs. nn.Linear)
    b2: (O,)     fc2 bias
    compute_dtype: optionally cast x/w1/w2 (e.g. jnp.bfloat16) for the native
    MXU path; biases + accumulation stay fp32 and the output keeps x's dtype.
    """
    B, F = x.shape
    H = w1.shape[1]
    O = w2.shape[1]
    out_dtype = x.dtype

    if compute_dtype is not None:
        x = x.astype(compute_dtype)
        w1 = w1.astype(compute_dtype)
        w2 = w2.astype(compute_dtype)

    if tb is None:
        tb = _pick_batch_tile(B)
    # TODO(synk): pad/mask ragged batches instead of requiring divisibility.
    assert B % tb == 0, "batch must be divisible by the batch tile"
    nb = B // tb

    if tk is None:
        tk = _pick_k_tile(H, w2.dtype.itemsize)
    assert H % tk == 0, "hidden dim must be divisible by the fc2 K tile"
    nk = H // tk

    b1_2d = b1.reshape(1, H).astype(jnp.float32)
    b2_2d = b2.reshape(1, O).astype(jnp.float32)

    # Buffering: constant-index operands need only one buffer; x/out need one
    # buffer when their grid axis has a single tile (nothing to prefetch).
    single = dict(pipeline_mode=pl.Buffered(1))
    w1_mode = single
    bias_mode = single
    w2_mode = single if nk == 1 else {}
    x_mode = single if nb == 1 else {}
    out_mode = single if nb == 1 else {}

    # VMEM footprint (per core) -> explicit scoped-VMEM limit with slack.
    x_it, w1_it, w2_it = x.dtype.itemsize, w1.dtype.itemsize, w2.dtype.itemsize
    o_it = jnp.dtype(out_dtype).itemsize
    footprint = ((1 if nb == 1 else 2) * tb * F * x_it          # x buffers
                 + F * H * w1_it                                # w1 (resident)
                 + (1 if nk == 1 else 2) * tk * O * w2_it       # w2 slices
                 + (H + O) * 4                                  # biases
                 + (1 if nb == 1 else 2) * tb * O * o_it        # out buffers
                 + tb * H * w2_it                               # h scratch
                 + tb * O * 4)                                  # fp32 accumulator
    vmem_limit = min(128 << 20, max(32 << 20, int(1.5 * footprint) + (4 << 20)))

    # Advisory cost estimate so XLA schedules surrounding ops sensibly.
    flops = 2 * B * F * H + 2 * B * H * O
    bytes_accessed = (B * F * x_it + F * H * w1_it + H * 4
                      + (nb if nk > 1 else 1) * H * O * w2_it + O * 4
                      + B * O * o_it)

    return pl.pallas_call(
        mlp_kernel,
        out_shape=jax.ShapeDtypeStruct((B, O), out_dtype),
        grid_spec=pltpu.PrefetchScalarGridSpec(
            num_scalar_prefetch=0,
            grid=(nb, nk),
            in_specs=[
                pl.BlockSpec((tb, F), lambda i, k: (i, 0), **x_mode),      # x tile
                pl.BlockSpec((F, H), lambda i, k: (0, 0), **w1_mode),      # w1
                pl.BlockSpec((1, H), lambda i, k: (0, 0), **bias_mode),    # b1
                pl.BlockSpec((tk, O), lambda i, k: (k, 0), **w2_mode),     # w2 K-slice
                pl.BlockSpec((1, O), lambda i, k: (0, 0), **bias_mode),    # b2
            ],
            out_specs=pl.BlockSpec((tb, O), lambda i, k: (i, 0), **out_mode),
            scratch_shapes=[
                pltpu.VMEM((tb, H), w2.dtype),      # relu(fc1) activations
                pltpu.VMEM((tb, O), jnp.float32),   # fc2 fp32 accumulator
            ],
        ),
        compiler_params=pltpu.CompilerParams(
            dimension_semantics=("parallel", "arbitrary"),
            vmem_limit_bytes=vmem_limit,
        ),
        cost_estimate=pl.CostEstimate(
            flops=flops, transcendentals=0, bytes_accessed=bytes_accessed),
    )(x, w1, b1_2d, w2, b2_2d)


if __name__ == "__main__":
    # Small, lane-dense shapes consistent with the module
    # (Linear(F, H) -> ReLU -> Linear(H, H)); F and H multiples of 128 so
    # every load/store uses the full 128-lane width.
    batch = 16
    num_features = 128
    hidden_features = 256

    key = jax.random.PRNGKey(0)
    kx, kw1, kb1, kw2, kb2 = jax.random.split(key, 5)

    x = jax.random.normal(kx, (batch, num_features), dtype=jnp.float32)
    bound1 = 1.0 / (num_features ** 0.5)
    bound2 = 1.0 / (hidden_features ** 0.5)
    w1 = jax.random.uniform(kw1, (num_features, hidden_features),
                            minval=-bound1, maxval=bound1, dtype=jnp.float32)
    b1 = jax.random.uniform(kb1, (hidden_features,),
                            minval=-bound1, maxval=bound1, dtype=jnp.float32)
    w2 = jax.random.uniform(kw2, (hidden_features, hidden_features),
                            minval=-bound2, maxval=bound2, dtype=jnp.float32)
    b2 = jax.random.uniform(kb2, (hidden_features,),
                            minval=-bound2, maxval=bound2, dtype=jnp.float32)

    # Pure-JAX reference at highest matmul precision.
    hi = jax.lax.Precision.HIGHEST
    ref = jnp.maximum(jnp.dot(x, w1, precision=hi) + b1, 0.0)
    ref = jnp.dot(ref, w2, precision=hi) + b2

    # 1) Default path: single batch tile, w2 fully resident (nk == 1).
    out = jax.block_until_ready(custom_classifier(x, w1, b1, w2, b2))
    assert out.shape == (batch, hidden_features)
    assert jnp.allclose(out, ref, atol=2e-4, rtol=2e-4), "fp32 resident path mismatch"

    # 2) Forced fc2 K-tiling (exercises the reduction grid axis / accumulator).
    out_kt = jax.block_until_ready(custom_classifier(x, w1, b1, w2, b2, tk=128))
    assert jnp.allclose(out_kt, ref, atol=2e-4, rtol=2e-4), "fc2 K-tiled path mismatch"

    # 3) bf16 operand path (fp32 accumulation) — looser tolerance.
    out_bf = jax.block_until_ready(
        custom_classifier(x, w1, b1, w2, b2, compute_dtype=jnp.bfloat16))
    assert jnp.allclose(out_bf, ref, atol=5e-2, rtol=5e-2), "bf16 path mismatch"

    print("KERNEL_OK")
</pallas_src>

<mosaic_0001>
module attributes {stable_mosaic.version = 11 : i64} {
  func.func @mlp_kernel(%arg0: i32, %arg1: i32, %arg2: memref<16x128xf32, #tpu.memory_space<vmem>>, %arg3: memref<128x256xf32, #tpu.memory_space<vmem>>, %arg4: memref<1x256xf32, #tpu.memory_space<vmem>>, %arg5: memref<256x256xf32, #tpu.memory_space<vmem>>, %arg6: memref<1x256xf32, #tpu.memory_space<vmem>>, %arg7: memref<16x256xf32, #tpu.memory_space<vmem>>, %arg8: memref<16x256xf32, #tpu.memory_space<vmem>>, %arg9: memref<16x256xf32, #tpu.memory_space<vmem>>) attributes {dimension_semantics = [#tpu.dimension_semantics<parallel>, #tpu.dimension_semantics<arbitrary>], iteration_bounds = array<i64: 1, 1>, scalar_prefetch = 0 : i64, scratch_operands = 2 : i64, tpu.core_type = #tpu.core_type<tc>, window_params = [{pipeline_mode = #tpu.pipeline_mode<synchronous>, transform_indices = @transform_0, window_bounds = array<i64: 16, 128>}, {pipeline_mode = #tpu.pipeline_mode<synchronous>, transform_indices = @transform_1, window_bounds = array<i64: 128, 256>}, {pipeline_mode = #tpu.pipeline_mode<synchronous>, transform_indices = @transform_2, window_bounds = array<i64: 1, 256>}, {pipeline_mode = #tpu.pipeline_mode<synchronous>, transform_indices = @transform_3, window_bounds = array<i64: 256, 256>}, {pipeline_mode = #tpu.pipeline_mode<synchronous>, transform_indices = @transform_4, window_bounds = array<i64: 1, 256>}, {pipeline_mode = #tpu.pipeline_mode<synchronous>, transform_indices = @transform_5, window_bounds = array<i64: 16, 256>}]} {
    %c0_i32 = arith.constant 0 : i32
    %0 = arith.cmpi eq, %arg1, %c0_i32 : i32
    %1 = arith.extui %0 : i1 to i32
    %c0_i32_0 = arith.constant 0 : i32
    %2 = arith.cmpi ne, %1, %c0_i32_0 : i32
    scf.if %2 {
      %c0_9 = arith.constant 0 : index
      %c0_10 = arith.constant 0 : index
      %15 = vector.load %arg2[%c0_9, %c0_10] : memref<16x128xf32, #tpu.memory_space<vmem>>, vector<16x128xf32>
      %c0_11 = arith.constant 0 : index
      %c0_12 = arith.constant 0 : index
      %16 = vector.load %arg3[%c0_11, %c0_12] : memref<128x256xf32, #tpu.memory_space<vmem>>, vector<128x256xf32>
      %cst_13 = arith.constant dense<0.000000e+00> : vector<16x256xf32>
      %17 = tpu.matmul %15, %16, %cst_13 {dimension_numbers = #tpu.dot_dimension_numbers<[1], [0], [0], [1], [0, 0, 1, 1], [], []>} : vector<16x128xf32>, vector<128x256xf32>, vector<16x256xf32> -> vector<16x256xf32>
      %c0_14 = arith.constant 0 : index
      %c0_15 = arith.constant 0 : index
      %18 = vector.load %arg4[%c0_14, %c0_15] : memref<1x256xf32, #tpu.memory_space<vmem>>, vector<1x256xf32>
      %19 = vector.broadcast %18 : vector<1x256xf32> to vector<16x256xf32>
      %20 = arith.addf %17, %19 : vector<16x256xf32>
      %cst_16 = arith.constant 0.000000e+00 : f32
      %21 = vector.broadcast %cst_16 : f32 to vector<16x256xf32>
      %22 = arith.maximumf %20, %21 : vector<16x256xf32>
      %c0_17 = arith.constant 0 : index
      %c0_18 = arith.constant 0 : index
      %23 = vector.load %arg8[%c0_17, %c0_18] : memref<16x256xf32, #tpu.memory_space<vmem>>, vector<16x256xf32>
      tpu.vector_store %arg8[%c0_17, %c0_18], %22 {strides = array<i32>} : memref<16x256xf32, #tpu.memory_space<vmem>>, vector<16x256xf32>,
      %cst_19 = arith.constant 0.000000e+00 : f32
      %24 = vector.broadcast %cst_19 : f32 to vector<16x256xf32>
      %c0_20 = arith.constant 0 : index
      %c0_21 = arith.constant 0 : index
      %25 = vector.load %arg9[%c0_20, %c0_21] : memref<16x256xf32, #tpu.memory_space<vmem>>, vector<16x256xf32>
      tpu.vector_store %arg9[%c0_20, %c0_21], %24 {strides = array<i32>} : memref<16x256xf32, #tpu.memory_space<vmem>>, vector<16x256xf32>,
    } else {
    }
    %c256_i32 = arith.constant 256 : i32
    %3 = arith.muli %arg1, %c256_i32 : i32
    %4 = tpu.assume_multiple %3, 256 : i32
    %c0 = arith.constant 0 : index
    %c0_1 = arith.constant 0 : index
    %5 = vector.load %arg9[%c0, %c0_1] : memref<16x256xf32, #tpu.memory_space<vmem>>, vector<16x256xf32>
    %c0_2 = arith.constant 0 : index
    %6 = arith.index_cast %4 : i32 to index
    %7 = vector.load %arg8[%c0_2, %6] : memref<16x256xf32, #tpu.memory_space<vmem>>, vector<16x256xf32>
    %c0_3 = arith.constant 0 : index
    %c0_4 = arith.constant 0 : index
    %8 = vector.load %arg5[%c0_3, %c0_4] : memref<256x256xf32, #tpu.memory_space<vmem>>, vector<256x256xf32>
    %cst = arith.constant dense<0.000000e+00> : vector<16x256xf32>
    %9 = tpu.matmul %7, %8, %cst {dimension_numbers = #tpu.dot_dimension_numbers<[1], [0], [0], [1], [0, 0, 1, 1], [], []>} : vector<16x256xf32>, vector<256x256xf32>, vector<16x256xf32> -> vector<16x256xf32>
    %10 = arith.addf %5, %9 : vector<16x256xf32>
    %c0_5 = arith.constant 0 : index
    %c0_6 = arith.constant 0 : index
    %11 = vector.load %arg9[%c0_5, %c0_6] : memref<16x256xf32, #tpu.memory_space<vmem>>, vector<16x256xf32>
    tpu.vector_store %arg9[%c0_5, %c0_6], %10 {strides = array<i32>} : memref<16x256xf32, #tpu.memory_space<vmem>>, vector<16x256xf32>,
    %c0_i32_7 = arith.constant 0 : i32
    %12 = arith.cmpi eq, %arg1, %c0_i32_7 : i32
    %13 = arith.extui %12 : i1 to i32
    %c0_i32_8 = arith.constant 0 : i32
    %14 = arith.cmpi ne, %13, %c0_i32_8 : i32
    scf.if %14 {
      %c0_9 = arith.constant 0 : index
      %c0_10 = arith.constant 0 : index
      %15 = vector.load %arg9[%c0_9, %c0_10] : memref<16x256xf32, #tpu.memory_space<vmem>>, vector<16x256xf32>
      %c0_11 = arith.constant 0 : index
      %c0_12 = arith.constant 0 : index
      %16 = vector.load %arg6[%c0_11, %c0_12] : memref<1x256xf32, #tpu.memory_space<vmem>>, vector<1x256xf32>
      %17 = vector.broadcast %16 : vector<1x256xf32> to vector<16x256xf32>
      %18 = arith.addf %15, %17 : vector<16x256xf32>
      %c0_13 = arith.constant 0 : index
      %c0_14 = arith.constant 0 : index
      %19 = vector.load %arg7[%c0_13, %c0_14] : memref<16x256xf32, #tpu.memory_space<vmem>>, vector<16x256xf32>
      tpu.vector_store %arg7[%c0_13, %c0_14], %18 {strides = array<i32>} : memref<16x256xf32, #tpu.memory_space<vmem>>, vector<16x256xf32>,
    } else {
    }
    return
  }
  func.func @transform_0(%arg0: i32, %arg1: i32) -> (i32, i32) {
    %c0_i32 = arith.constant 0 : i32
    %c0_i32_0 = arith.constant 0 : i32
    return %arg0, %c0_i32 : i32, i32
  }
  func.func @transform_1(%arg0: i32, %arg1: i32) -> (i32, i32) {
    %c0_i32 = arith.constant 0 : i32
    %c0_i32_0 = arith.constant 0 : i32
    %c0_i32_1 = arith.constant 0 : i32
    return %c0_i32, %c0_i32_0 : i32, i32
  }
  func.func @transform_2(%arg0: i32, %arg1: i32) -> (i32, i32) {
    %c0_i32 = arith.constant 0 : i32
    %c0_i32_0 = arith.constant 0 : i32
    %c0_i32_1 = arith.constant 0 : i32
    return %c0_i32, %c0_i32_0 : i32, i32
  }
  func.func @transform_3(%arg0: i32, %arg1: i32) -> (i32, i32) {
    %c0_i32 = arith.constant 0 : i32
    %c0_i32_0 = arith.constant 0 : i32
    return %arg1, %c0_i32 : i32, i32
  }
  func.func @transform_4(%arg0: i32, %arg1: i32) -> (i32, i32) {
    %c0_i32 = arith.constant 0 : i32
    %c0_i32_0 = arith.constant 0 : i32
    %c0_i32_1 = arith.constant 0 : i32
    return %c0_i32, %c0_i32_0 : i32, i32
  }
  func.func @transform_5(%arg0: i32, %arg1: i32) -> (i32, i32) {
    %c0_i32 = arith.constant 0 : i32
    %c0_i32_0 = arith.constant 0 : i32
    return %arg0, %c0_i32 : i32, i32
  }
}

</mosaic_0001>

<llo_original>
// kernel: tpu_custom_call.1
$region0: #{tpu_custom_call.1}
  #allocation0 [shape = 'u32[]', space=smem, size = 0x4, offset = 0x4, fixed_abs, tag = 'smem constant byte address 0x4 - core index']
  #allocation1 [shape = 'u32[144,128]{1,0:T(1,128)}', space=vmem, size = 0x12000, scoped, tag = 'internal scratch']
  #allocation2 [shape = 'f32[16,256]{1,0:T(8,128)}', space=vmem, size = 0x4000, scoped, tag = 'scratch operand']
  #allocation3 [shape = 'f32[16,256]{1,0:T(8,128)}', space=vmem, size = 0x4000, scoped, tag = 'scratch operand']
  %s0 = inlined_call_operand.hbm [shape: f32[16,128], index: 0, kind: input, shape index: {}]
  %s1 = inlined_call_operand.hbm [shape: f32[128,256], index: 1, kind: input, shape index: {}]
  %s2 = inlined_call_operand.vmem [shape: f32[1,256], index: 2, kind: input, shape index: {}]
  %s3 = inlined_call_operand.hbm [shape: f32[256,256], index: 3, kind: input, shape index: {}]
  %s4 = inlined_call_operand.vmem [shape: f32[1,256], index: 4, kind: input, shape index: {}]
  %s5 = inlined_call_operand.hbm [shape: f32[16,256], index: 5, kind: output, shape index: {}]
  %s6 = sld [smem:[#allocation0]]
  $region50: #{tpu_custom_call.1} parent=0
    _
  %s8 = ssub.s32 1, %s6
  %s9 = scalar_select 0, %s8, %s6
  $region1: #{tpu_custom_call.1} parent=0
    #allocation4 [shape = 'u8[8192]{0}', space=vmem, size = 0x2000, scoped, tag = 'input window, operand 0, single buffered']
    #allocation5 [shape = 's32[1]{0}', space=sflag, size = 0x4, scoped, tag = 'scoped memory for tpu_custom_call.1']
    #allocation6 [shape = 's32[1]{0}', space=sflag, size = 0x4, scoped, tag = 'scoped memory for tpu_custom_call.1']
    #allocation7 [shape = 'u8[131072]{0}', space=vmem, size = 0x20000, scoped, tag = 'input window, operand 1, single buffered']
    #allocation8 [shape = 's32[1]{0}', space=sflag, size = 0x4, scoped, tag = 'scoped memory for tpu_custom_call.1']
    #allocation9 [shape = 'u8[262144]{0}', space=vmem, size = 0x40000, scoped, tag = 'input window, operand 3, single buffered']
    #allocation10 [shape = 'u8[16384]{0}', space=vmem, size = 0x4000, scoped, tag = 'output window, operand 0, single buffered']
    %10 = vsyncpa [#allocation5], 0
    %11 = vsyncpa [#allocation8], 0
    %12 = vsyncpa [#allocation6], 0
    // Predicated region
    $region2: #{tpu_custom_call.1} parent=1 // pred_check
      _
    $region3: #{tpu_custom_call.1} parent=1 // pred_check_branch
      %14 = sbr.rel (0) target = $region5
    $region4: #{tpu_custom_call.1} parent=1 // pred_region
      %s16 = ssub.s32 256, 256
      %17 = vsyncadd [#allocation5], %s16
      %s18 = sshll.u32 [#allocation4], 4
      %s19 = int_to_ptr.vmem [resolvable:$true] %s18
      %24 = dma.hbm_to_vmem [thread:$0]  %s0, 256, %s19, [#allocation5], 128, 128, 8
    $region5: #{tpu_custom_call.1} parent=1 // pred_fallthru
      _
    // Predicated region
    $region6: #{tpu_custom_call.1} parent=1 // pred_check
      _
    $region7: #{tpu_custom_call.1} parent=1 // pred_check_branch
      %26 = sbr.rel (0) target = $region9
    $region8: #{tpu_custom_call.1} parent=1 // pred_region
      %s28 = ssub.s32 4096, 4096
      %29 = vsyncadd [#allocation8], %s28
      %s30 = sshll.u32 [#allocation7], 4
      %s31 = int_to_ptr.vmem [resolvable:$true] %s30
      %36 = dma.hbm_to_vmem [thread:$0]  %s1, 4096, %s31, [#allocation8], 256, 256, 16
    $region9: #{tpu_custom_call.1} parent=1 // pred_fallthru
      _
    // Predicated region
    $region10: #{tpu_custom_call.1} parent=1 // pred_check
      _
    $region11: #{tpu_custom_call.1} parent=1 // pred_check_branch
      %38 = sbr.rel (0) target = $region13
    $region12: #{tpu_custom_call.1} parent=1 // pred_region
      _
    $region13: #{tpu_custom_call.1} parent=1 // pred_fallthru
      _
    // Predicated region
    $region14: #{tpu_custom_call.1} parent=1 // pred_check
      _
    $region15: #{tpu_custom_call.1} parent=1 // pred_check_branch
      %40 = sbr.rel (0) target = $region17
    $region16: #{tpu_custom_call.1} parent=1 // pred_region
      %s42 = ssub.s32 8192, 8192
      %43 = vsyncadd [#allocation8], %s42
      %s44 = sshll.u32 [#allocation9], 4
      %s45 = int_to_ptr.vmem [resolvable:$true] %s44
      %50 = dma.hbm_to_vmem [thread:$0]  %s3, 8192, %s45, [#allocation8], 256, 256, 16
    $region17: #{tpu_custom_call.1} parent=1 // pred_fallthru
      _
    // Predicated region
    $region18: #{tpu_custom_call.1} parent=1 // pred_check
      _
    $region19: #{tpu_custom_call.1} parent=1 // pred_check_branch
      %52 = sbr.rel (0) target = $region21
    $region20: #{tpu_custom_call.1} parent=1 // pred_region
      _
    $region21: #{tpu_custom_call.1} parent=1 // pred_fallthru
      _
    // Predicated region
    $region22: #{tpu_custom_call.1} parent=1 // pred_check
      _
    $region23: #{tpu_custom_call.1} parent=1 // pred_check_branch
      %54 = sbr.rel (0) target = $region25
    $region24: #{tpu_custom_call.1} parent=1 // pred_region
      %55 = dma.done [#allocation5], 256
    $region25: #{tpu_custom_call.1} parent=1 // pred_fallthru
      _
    // Predicated region
    $region26: #{tpu_custom_call.1} parent=1 // pred_check
      _
    $region27: #{tpu_custom_call.1} parent=1 // pred_check_branch
      %57 = sbr.rel (0) target = $region29
    $region28: #{tpu_custom_call.1} parent=1 // pred_region
      %58 = dma.done [#allocation8], 4096
    $region29: #{tpu_custom_call.1} parent=1 // pred_fallthru
      _
    // Predicated region
    $region30: #{tpu_custom_call.1} parent=1 // pred_check
      _
    $region31: #{tpu_custom_call.1} parent=1 // pred_check_branch
      %60 = sbr.rel (0) target = $region33
    $region32: #{tpu_custom_call.1} parent=1 // pred_region
      %61 = dma.done [#allocation8], 8192
    $region33: #{tpu_custom_call.1} parent=1 // pred_fallthru
      _
    %p62 = scmp.eq.s32.totalorder 0, 0
    // Predicated region
    $region34: #{tpu_custom_call.1} parent=1 // pred_check
      %p63 = pneg %p62
    $region35: #{tpu_custom_call.1} parent=1 // pred_check_branch
      %65 = sbr.rel (%p63) target = $region37
    $region36: #{tpu_custom_call.1} parent=1 // pred_region
      %v66 = vld [vmem:[#allocation4] sm:$0xff]
      %v67 = vld [vmem:[#allocation4 + $0x8] sm:$0xff]
      %v68 = vld [vmem:[#allocation7] sm:$0xff]
      %v69 = vld [vmem:[#allocation7 + $0x8] sm:$0xff]
      %v70 = vld [vmem:[#allocation7 + $0x10] sm:$0xff]
      %v71 = vld [vmem:[#allocation7 + $0x18] sm:$0xff]
      %v72 = vld [vmem:[#allocation7 + $0x20] sm:$0xff]
      %v73 = vld [vmem:[#allocation7 + $0x28] sm:$0xff]
      %v74 = vld [vmem:[#allocation7 + $0x30] sm:$0xff]
      %v75 = vld [vmem:[#allocation7 + $0x38] sm:$0xff]
      %v76 = vld [vmem:[#allocation7 + $0x40] sm:$0xff]
      %v77 = vld [vmem:[#allocation7 + $0x48] sm:$0xff]
      %v78 = vld [vmem:[#allocation7 + $0x50] sm:$0xff]
      %v79 = vld [vmem:[#allocation7 + $0x58] sm:$0xff]
      %v80 = vld [vmem:[#allocation7 + $0x60] sm:$0xff]
      %v81 = vld [vmem:[#allocation7 + $0x68] sm:$0xff]
      %v82 = vld [vmem:[#allocation7 + $0x70] sm:$0xff]
      %v83 = vld [vmem:[#allocation7 + $0x78] sm:$0xff]
      %v84 = vld [vmem:[#allocation7 + $0x80] sm:$0xff]
      %v85 = vld [vmem:[#allocation7 + $0x88] sm:$0xff]
      %v86 = vld [vmem:[#allocation7 + $0x90] sm:$0xff]
      %v87 = vld [vmem:[#allocation7 + $0x98] sm:$0xff]
      %v88 = vld [vmem:[#allocation7 + $0xa0] sm:$0xff]
      %v89 = vld [vmem:[#allocation7 + $0xa8] sm:$0xff]
      %v90 = vld [vmem:[#allocation7 + $0xb0] sm:$0xff]
      %v91 = vld [vmem:[#allocation7 + $0xb8] sm:$0xff]
      %v92 = vld [vmem:[#allocation7 + $0xc0] sm:$0xff]
      %v93 = vld [vmem:[#allocation7 + $0xc8] sm:$0xff]
      %v94 = vld [vmem:[#allocation7 + $0xd0] sm:$0xff]
      %v95 = vld [vmem:[#allocation7 + $0xd8] sm:$0xff]
      %v96 = vld [vmem:[#allocation7 + $0xe0] sm:$0xff]
      %v97 = vld [vmem:[#allocation7 + $0xe8] sm:$0xff]
      %v98 = vld [vmem:[#allocation7 + $0xf0] sm:$0xff]
      %v99 = vld [vmem:[#allocation7 + $0xf8] sm:$0xff]
      %v100 = vld [vmem:[%s2] sm:$0x3]
      %v102 = vlaneseq
      %v103 = vshrl.u32 %v102, 7
      %v104 = vsub.s32 0, %v103
      %v105 = vrot.slane %v100, %v104
      %v106 = vlaneseq
      %v107 = vshrl.u32 %v106, 7
      %v108 = vsub.s32 1, %v107
      %v109 = vrot.slane %v100, %v108
      %112 = vmatprep.subr.mxu0 %v69
      %113 = vmatpush1.msra.mxu0 %v68
      %114 = vmatprep.subr.mxu0 %v71
      %115 = vmatpush1.msra.mxu0 %v70
      %116 = vmatprep.subr.mxu0 %v73
      %117 = vmatpush1.msra.mxu0 %v72
      %118 = vmatprep.subr.mxu0 %v75
      %119 = vmatpush1.msra.mxu0 %v74
      %120 = vmatprep.subr.mxu0 %v77
      %121 = vmatpush1.msra.mxu0 %v76
      %122 = vmatprep.subr.mxu0 %v79
      %123 = vmatpush1.msra.mxu0 %v78
      %124 = vmatprep.subr.mxu0 %v81
      %125 = vmatpush1.msra.mxu0 %v80
      %126 = vmatprep.subr.mxu0 %v83
      %127 = vmatpush1.msra.mxu0 %v82
      %128 = vmatprep.subr.mxu0 %v85
      %129 = vmatpush1.msra.mxu0 %v84
      %130 = vmatprep.subr.mxu0 %v87
      %131 = vmatpush1.msra.mxu0 %v86
      %132 = vmatprep.subr.mxu0 %v89
      %133 = vmatpush1.msra.mxu0 %v88
      %134 = vmatprep.subr.mxu0 %v91
      %135 = vmatpush1.msra.mxu0 %v90
      %136 = vmatprep.subr.mxu0 %v93
      %137 = vmatpush1.msra.mxu0 %v92
      %138 = vmatprep.subr.mxu0 %v95
      %139 = vmatpush1.msra.mxu0 %v94
      %140 = vmatprep.subr.mxu0 %v97
      %141 = vmatpush1.msra.mxu0 %v96
      %142 = vmatprep.subr.mxu0 %v99
      %143 = vmatpush1.msra.mxu0 %v98
      %144 = vmatprep.subr.mxu0 0.0
      %145 = vmatpush1.msra.mxu0 0.0
      %146 = vmatprep.subr.mxu0 0.0
      %147 = vmatpush1.msra.mxu0 0.0
      %148 = vmatprep.subr.mxu0 0.0
      %149 = vmatpush1.msra.mxu0 0.0
      %150 = vmatprep.subr.mxu0 0.0
      %151 = vmatpush1.msra.mxu0 0.0
      %152 = vmatprep.subr.mxu0 0.0
      %153 = vmatpush1.msra.mxu0 0.0
      %154 = vmatprep.subr.mxu0 0.0
      %155 = vmatpush1.msra.mxu0 0.0
      %156 = vmatprep.subr.mxu0 0.0
      %157 = vmatpush1.msra.mxu0 0.0
      %158 = vmatprep.subr.mxu0 0.0
      %159 = vmatpush1.msra.mxu0 0.0
      %160 = vmatprep.subr.mxu0 0.0
      %161 = vmatpush1.msra.mxu0 0.0
      %162 = vmatprep.subr.mxu0 0.0
      %163 = vmatpush1.msra.mxu0 0.0
      %164 = vmatprep.subr.mxu0 0.0
      %165 = vmatpush1.msra.mxu0 0.0
      %166 = vmatprep.subr.mxu0 0.0
      %167 = vmatpush1.msra.mxu0 0.0
      %168 = vmatprep.subr.mxu0 0.0
      %169 = vmatpush1.msra.mxu0 0.0
      %170 = vmatprep.subr.mxu0 0.0
      %171 = vmatpush1.msra.mxu0 0.0
      %172 = vmatprep.subr.mxu0 0.0
      %173 = vmatpush1.msra.mxu0 0.0
      %174 = vmatprep.subr.mxu0 0.0
      %175 = vmatpush1.msra.mxu0 0.0
      %176 = vmatprep.mubr.f32.mxu0 0.0
      %177 = vmatmul.mubr.f32.gmra.mrb[0].mxu0 %v66
      %v178 = vpop.f32.mrb[0].mxu0
      %v179 = vadd.f32 %v105, %v178
      %v180 = vpop.f32.mrb[0].mxu0
      %v181 = vadd.f32 %v109, %v180
      %182 = vmatprep.mubr.f32.mxu0 0.0
      %183 = vmatmul.mubr.f32.gmra.mrb[0].mxu0 %v67
      %v184 = vpop.f32.mrb[0].mxu0
      %v185 = vadd.f32 %v105, %v184
      %v186 = vpop.f32.mrb[0].mxu0
      %v187 = vadd.f32 %v109, %v186
      %188 = vdwg.mxu0
      %v189 = vmax.f32 %v179, 0.0
      %v190 = vmax.f32 %v181, 0.0
      %v191 = vmax.f32 %v185, 0.0
      %v192 = vmax.f32 %v187, 0.0
      %193 = vst [vmem:[#allocation2] sm:$0xff] %v189
      %194 = vst [vmem:[#allocation2 + $0x8] sm:$0xff] %v190
      %195 = vst [vmem:[#allocation2 + $0x10] sm:$0xff] %v191
      %196 = vst [vmem:[#allocation2 + $0x18] sm:$0xff] %v192
      %197 = vst [vmem:[#allocation3] sm:$0xff] 0.0
      %198 = vst [vmem:[#allocation3 + $0x8] sm:$0xff] 0.0
      %199 = vst [vmem:[#allocation3 + $0x10] sm:$0xff] 0.0
      %200 = vst [vmem:[#allocation3 + $0x18] sm:$0xff] 0.0
    $region37: #{tpu_custom_call.1} parent=1 // pred_fallthru
      _
    %s201 = smul.u32 0, 256
    %v202 = vld [vmem:[#allocation3] sm:$0xff]
    %v203 = vld [vmem:[#allocation3 + $0x8] sm:$0xff]
    %v204 = vld [vmem:[#allocation3 + $0x10] sm:$0xff]
    %v205 = vld [vmem:[#allocation3 + $0x18] sm:$0xff]
    %s206 = sshra.s32 %s201, 7
    %s207 = sand.u32 %s201, 127
    %s208 = smul.addr %s206, 8
    %s209 = scalar_lea.vmem [#allocation2], %s208
    %v210 = vld [vmem:[%s209] sm:$0xff]
    %v211 = vld [vmem:[%s209 + $0x8] sm:$0xff]
    %v212 = vld [vmem:[%s209 + $0x10] sm:$0xff]
    %v213 = vld [vmem:[%s209 + $0x18] sm:$0xff]
    %v214 = vld [vmem:[#allocation9] sm:$0xff]
    %v215 = vld [vmem:[#allocation9 + $0x8] sm:$0xff]
    %v216 = vld [vmem:[#allocation9 + $0x10] sm:$0xff]
    %v217 = vld [vmem:[#allocation9 + $0x18] sm:$0xff]
    %v218 = vld [vmem:[#allocation9 + $0x20] sm:$0xff]
    %v219 = vld [vmem:[#allocation9 + $0x28] sm:$0xff]
    %v220 = vld [vmem:[#allocation9 + $0x30] sm:$0xff]
    %v221 = vld [vmem:[#allocation9 + $0x38] sm:$0xff]
    %v222 = vld [vmem:[#allocation9 + $0x40] sm:$0xff]
    %v223 = vld [vmem:[#allocation9 + $0x48] sm:$0xff]
    %v224 = vld [vmem:[#allocation9 + $0x50] sm:$0xff]
    %v225 = vld [vmem:[#allocation9 + $0x58] sm:$0xff]
    %v226 = vld [vmem:[#allocation9 + $0x60] sm:$0xff]
    %v227 = vld [vmem:[#allocation9 + $0x68] sm:$0xff]
    %v228 = vld [vmem:[#allocation9 + $0x70] sm:$0xff]
    %v229 = vld [vmem:[#allocation9 + $0x78] sm:$0xff]
    %v230 = vld [vmem:[#allocation9 + $0x80] sm:$0xff]
    %v231 = vld [vmem:[#allocation9 + $0x88] sm:$0xff]
    %v232 = vld [vmem:[#allocation9 + $0x90] sm:$0xff]
    %v233 = vld [vmem:[#allocation9 + $0x98] sm:$0xff]
    %v234 = vld [vmem:[#allocation9 + $0xa0] sm:$0xff]
    %v235 = vld [vmem:[#allocation9 + $0xa8] sm:$0xff]
    %v236 = vld [vmem:[#allocation9 + $0xb0] sm:$0xff]
    %v237 = vld [vmem:[#allocation9 + $0xb8] sm:$0xff]
    %v238 = vld [vmem:[#allocation9 + $0xc0] sm:$0xff]
    %v239 = vld [vmem:[#allocation9 + $0xc8] sm:$0xff]
    %v240 = vld [vmem:[#allocation9 + $0xd0] sm:$0xff]
    %v241 = vld [vmem:[#allocation9 + $0xd8] sm:$0xff]
    %v242 = vld [vmem:[#allocation9 + $0xe0] sm:$0xff]
    %v243 = vld [vmem:[#allocation9 + $0xe8] sm:$0xff]
    %v244 = vld [vmem:[#allocation9 + $0xf0] sm:$0xff]
    %v245 = vld [vmem:[#allocation9 + $0xf8] sm:$0xff]
    %v246 = vld [vmem:[#allocation9 + $0x100] sm:$0xff]
    %v247 = vld [vmem:[#allocation9 + $0x108] sm:$0xff]
    %v248 = vld [vmem:[#allocation9 + $0x110] sm:$0xff]
    %v249 = vld [vmem:[#allocation9 + $0x118] sm:$0xff]
    %v250 = vld [vmem:[#allocation9 + $0x120] sm:$0xff]
    %v251 = vld [vmem:[#allocation9 + $0x128] sm:$0xff]
    %v252 = vld [vmem:[#allocation9 + $0x130] sm:$0xff]
    %v253 = vld [vmem:[#allocation9 + $0x138] sm:$0xff]
    %v254 = vld [vmem:[#allocation9 + $0x140] sm:$0xff]
    %v255 = vld [vmem:[#allocation9 + $0x148] sm:$0xff]
    %v256 = vld [vmem:[#allocation9 + $0x150] sm:$0xff]
    %v257 = vld [vmem:[#allocation9 + $0x158] sm:$0xff]
    %v258 = vld [vmem:[#allocation9 + $0x160] sm:$0xff]
    %v259 = vld [vmem:[#allocation9 + $0x168] sm:$0xff]
    %v260 = vld [vmem:[#allocation9 + $0x170] sm:$0xff]
    %v261 = vld [vmem:[#allocation9 + $0x178] sm:$0xff]
    %v262 = vld [vmem:[#allocation9 + $0x180] sm:$0xff]
    %v263 = vld [vmem:[#allocation9 + $0x188] sm:$0xff]
    %v264 = vld [vmem:[#allocation9 + $0x190] sm:$0xff]
    %v265 = vld [vmem:[#allocation9 + $0x198] sm:$0xff]
    %v266 = vld [vmem:[#allocation9 + $0x1a0] sm:$0xff]
    %v267 = vld [vmem:[#allocation9 + $0x1a8] sm:$0xff]
    %v268 = vld [vmem:[#allocation9 + $0x1b0] sm:$0xff]
    %v269 = vld [vmem:[#allocation9 + $0x1b8] sm:$0xff]
    %v270 = vld [vmem:[#allocation9 + $0x1c0] sm:$0xff]
    %v271 = vld [vmem:[#allocation9 + $0x1c8] sm:$0xff]
    %v272 = vld [vmem:[#allocation9 + $0x1d0] sm:$0xff]
    %v273 = vld [vmem:[#allocation9 + $0x1d8] sm:$0xff]
    %v274 = vld [vmem:[#allocation9 + $0x1e0] sm:$0xff]
    %v275 = vld [vmem:[#allocation9 + $0x1e8] sm:$0xff]
    %v276 = vld [vmem:[#allocation9 + $0x1f0] sm:$0xff]
    %v277 = vld [vmem:[#allocation9 + $0x1f8] sm:$0xff]
    %278 = vmatprep.subr.mxu0 %v215
    %279 = vmatpush1.msra.mxu0 %v214
    %280 = vmatprep.subr.mxu0 %v217
    %281 = vmatpush1.msra.mxu0 %v216
    %282 = vmatprep.subr.mxu0 %v219
    %283 = vmatpush1.msra.mxu0 %v218
    %284 = vmatprep.subr.mxu0 %v221
    %285 = vmatpush1.msra.mxu0 %v220
    %286 = vmatprep.subr.mxu0 %v223
    %287 = vmatpush1.msra.mxu0 %v222
    %288 = vmatprep.subr.mxu0 %v225
    %289 = vmatpush1.msra.mxu0 %v224
    %290 = vmatprep.subr.mxu0 %v227
    %291 = vmatpush1.msra.mxu0 %v226
    %292 = vmatprep.subr.mxu0 %v229
    %293 = vmatpush1.msra.mxu0 %v228
    %294 = vmatprep.subr.mxu0 %v231
    %295 = vmatpush1.msra.mxu0 %v230
    %296 = vmatprep.subr.mxu0 %v233
    %297 = vmatpush1.msra.mxu0 %v232
    %298 = vmatprep.subr.mxu0 %v235
    %299 = vmatpush1.msra.mxu0 %v234
    %300 = vmatprep.subr.mxu0 %v237
    %301 = vmatpush1.msra.mxu0 %v236
    %302 = vmatprep.subr.mxu0 %v239
    %303 = vmatpush1.msra.mxu0 %v238
    %304 = vmatprep.subr.mxu0 %v241
    %305 = vmatpush1.msra.mxu0 %v240
    %306 = vmatprep.subr.mxu0 %v243
    %307 = vmatpush1.msra.mxu0 %v242
    %308 = vmatprep.subr.mxu0 %v245
    %309 = vmatpush1.msra.mxu0 %v244
    %310 = vmatprep.subr.mxu0 %v247
    %311 = vmatpush1.msra.mxu0 %v246
    %312 = vmatprep.subr.mxu0 %v249
    %313 = vmatpush1.msra.mxu0 %v248
    %314 = vmatprep.subr.mxu0 %v251
    %315 = vmatpush1.msra.mxu0 %v250
    %316 = vmatprep.subr.mxu0 %v253
    %317 = vmatpush1.msra.mxu0 %v252
    %318 = vmatprep.subr.mxu0 %v255
    %319 = vmatpush1.msra.mxu0 %v254
    %320 = vmatprep.subr.mxu0 %v257
    %321 = vmatpush1.msra.mxu0 %v256
    %322 = vmatprep.subr.mxu0 %v259
    %323 = vmatpush1.msra.mxu0 %v258
    %324 = vmatprep.subr.mxu0 %v261
    %325 = vmatpush1.msra.mxu0 %v260
    %326 = vmatprep.subr.mxu0 %v263
    %327 = vmatpush1.msra.mxu0 %v262
    %328 = vmatprep.subr.mxu0 %v265
    %329 = vmatpush1.msra.mxu0 %v264
    %330 = vmatprep.subr.mxu0 %v267
    %331 = vmatpush1.msra.mxu0 %v266
    %332 = vmatprep.subr.mxu0 %v269
    %333 = vmatpush1.msra.mxu0 %v268
    %334 = vmatprep.subr.mxu0 %v271
    %335 = vmatpush1.msra.mxu0 %v270
    %336 = vmatprep.subr.mxu0 %v273
    %337 = vmatpush1.msra.mxu0 %v272
    %338 = vmatprep.subr.mxu0 %v275
    %339 = vmatpush1.msra.mxu0 %v274
    %340 = vmatprep.subr.mxu0 %v277
    %341 = vmatpush1.msra.mxu0 %v276
    %342 = vmatprep.mubr.f32.mxu0 %v211
    %343 = vmatmul.mubr.f32.gmra.mrb[0].mxu0 %v210
    %v344 = vpop.f32.mrb[0].mxu0
    %v345 = vadd.f32 0.0, %v344
    %v346 = vpop.f32.mrb[0].mxu0
    %v347 = vadd.f32 0.0, %v346
    %348 = vmatprep.mubr.f32.mxu0 %v213
    %349 = vmatmul.mubr.f32.gmra.mrb[0].mxu0 %v212
    %v350 = vpop.f32.mrb[0].mxu0
    %v351 = vadd.f32 0.0, %v350
    %v352 = vpop.f32.mrb[0].mxu0
    %v353 = vadd.f32 0.0, %v352
    %354 = vdwg.mxu0
    %v355 = vadd.f32 %v202, %v345
    %v356 = vadd.f32 %v203, %v347
    %v357 = vadd.f32 %v204, %v351
    %v358 = vadd.f32 %v205, %v353
    %359 = vst [vmem:[#allocation3] sm:$0xff] %v355
    %360 = vst [vmem:[#allocation3 + $0x8] sm:$0xff] %v356
    %361 = vst [vmem:[#allocation3 + $0x10] sm:$0xff] %v357
    %362 = vst [vmem:[#allocation3 + $0x18] sm:$0xff] %v358
    // Predicated region
    $region38: #{tpu_custom_call.1} parent=1 // pred_check
      %p363 = pneg %p62
    $region39: #{tpu_custom_call.1} parent=1 // pred_check_branch
      %365 = sbr.rel (%p363) target = $region41
    $region40: #{tpu_custom_call.1} parent=1 // pred_region
      %v366 = vld [vmem:[#allocation3] sm:$0xff]
      %v367 = vld [vmem:[#allocation3 + $0x8] sm:$0xff]
      %v368 = vld [vmem:[#allocation3 + $0x10] sm:$0xff]
      %v369 = vld [vmem:[#allocation3 + $0x18] sm:$0xff]
      %v370 = vld [vmem:[%s4] sm:$0x3]
      %v372 = vlaneseq
      %v373 = vshrl.u32 %v372, 7
      %v374 = vsub.s32 0, %v373
      %v375 = vrot.slane %v370, %v374
      %v376 = vlaneseq
      %v377 = vshrl.u32 %v376, 7
      %v378 = vsub.s32 1, %v377
      %v379 = vrot.slane %v370, %v378
      %v382 = vadd.f32 %v366, %v375
      %v383 = vadd.f32 %v367, %v379
      %v384 = vadd.f32 %v368, %v375
      %v385 = vadd.f32 %v369, %v379
      %386 = vst [vmem:[#allocation10] sm:$0xff] %v382
      %387 = vst [vmem:[#allocation10 + $0x8] sm:$0xff] %v383
      %388 = vst [vmem:[#allocation10 + $0x10] sm:$0xff] %v384
      %389 = vst [vmem:[#allocation10 + $0x18] sm:$0xff] %v385
    $region41: #{tpu_custom_call.1} parent=1 // pred_fallthru
      _
    // Predicated region
    $region42: #{tpu_custom_call.1} parent=1 // pred_check
      _
    $region43: #{tpu_custom_call.1} parent=1 // pred_check_branch
      %391 = sbr.rel (0) target = $region45
    $region44: #{tpu_custom_call.1} parent=1 // pred_region
      %s393 = ssub.s32 512, 512
      %394 = vsyncadd [#allocation6], %s393
      %s395 = sshll.u32 [#allocation10], 4
      %s396 = int_to_ptr.vmem [resolvable:$true] %s395
      %401 = dma.vmem_to_hbm [thread:$0]  %s396, 512, %s5, [#allocation6], 256, 256, 16
    $region45: #{tpu_custom_call.1} parent=1 // pred_fallthru
      _
    // Predicated region
    $region46: #{tpu_custom_call.1} parent=1 // pred_check
      _
    $region47: #{tpu_custom_call.1} parent=1 // pred_check_branch
      %403 = sbr.rel (0) target = $region49
    $region48: #{tpu_custom_call.1} parent=1 // pred_region
      %404 = dma.done [#allocation6], 512
    $region49: #{tpu_custom_call.1} parent=1 // pred_fallthru
      _
    %405 = vsyncpa [#allocation5], 1
    %406 = vsyncpa [#allocation8], 1
    %407 = vsyncpa [#allocation6], 1

</llo_original>
